<compile_context>
chip_gen: v5e
topology: v5e:2x2
jax: 0.10.0
libtpu: 0.0.40
codegen_flags: <defaults>
</compile_context>

<pallas_src>
from functools import partial

import jax
import jax.numpy as jnp
from jax.experimental import pallas as pl
from jax.experimental.pallas import tpu as pltpu

EPS = 1e-05

_VMEM = pl.BlockSpec(memory_space=pltpu.MemorySpace.VMEM)
_SMEM = pl.BlockSpec(memory_space=pltpu.MemorySpace.SMEM)


def _pick_lane_tile(n):
    """Largest lane tile (multiple of 128, few-MiB cap) dividing n; else whole n."""
    for t in (32768, 16384, 8192, 4096, 2048, 1024, 512, 256, 128):
        if n % t == 0:
            return t
    return n


# ----------------------------- kernels ------------------------------------ #

def _layer_norm_kernel(x_ref, w_ref, b_ref, o_ref):
    # nn.LayerNorm(normalized_shape=3, eps=1e-5, elementwise_affine=True)
    # x_ref/o_ref: [3, tn] (xyz on sublanes, bodies on lanes); w/b: SMEM [3].
    x0 = x_ref[0:1, :]
    x1 = x_ref[1:2, :]
    x2 = x_ref[2:3, :]
    mu = (x0 + x1 + x2) * (1.0 / 3.0)
    d0 = x0 - mu
    d1 = x1 - mu
    d2 = x2 - mu
    var = (d0 * d0 + d1 * d1 + d2 * d2) * (1.0 / 3.0)   # biased variance (torch)
    inv = jax.lax.rsqrt(var + EPS)                      # EUP rsqrt, [1, tn]
    o_ref[0:1, :] = d0 * inv * w_ref[0] + b_ref[0]
    o_ref[1:2, :] = d1 * inv * w_ref[1] + b_ref[1]
    o_ref[2:3, :] = d2 * inv * w_ref[2] + b_ref[2]


def _vfs_norm_kernel(x_ref, g_ref, o_ref):
    # g.unsqueeze(1) * (x / ||x||)  with x as [3, tn], g as [1, tn].
    x0 = x_ref[0:1, :]
    x1 = x_ref[1:2, :]
    x2 = x_ref[2:3, :]
    inv = jax.lax.rsqrt(x0 * x0 + x1 * x1 + x2 * x2)    # 1/||x||  (no eps, as torch)
    scale = g_ref[...] * inv                            # [1, tn]
    o_ref[0:1, :] = x0 * scale
    o_ref[1:2, :] = x1 * scale
    o_ref[2:3, :] = x2 * scale


def _get_norm_kernel(x_ref, g_ref, rm_ref, o_ref):
    # x_ref/o_ref: [3, b, l]; g_ref: [b, 1]; rm_ref: int32 [b, l] with
    # rm[i, j] = (i*l + j) % b  (torch `.repeat(l, 1)` row -> param mapping).
    b = x_ref.shape[1]
    l = x_ref.shape[2]
    x0 = x_ref[0]
    x1 = x_ref[1]
    x2 = x_ref[2]                                       # each [b, l]
    inv_l = 1.0 / l
    mu0 = jnp.sum(x0, axis=1, keepdims=True) * inv_l    # [b, 1]
    mu1 = jnp.sum(x1, axis=1, keepdims=True) * inv_l
    mu2 = jnp.sum(x2, axis=1, keepdims=True) * inv_l
    d0 = x0 - mu0
    d1 = x1 - mu1
    d2 = x2 - mu2
    ssq = jnp.sum(d0 * d0 + d1 * d1 + d2 * d2, axis=1, keepdims=True)  # [b, 1]
    std = jnp.sqrt(ssq)                                 # sqrt of SUM of sq-dev (as torch)
    coef = g_ref[...] * pl.reciprocal(std + EPS, approx=False)          # [b, 1]
    # scale[i, j] = coef[rm[i, j]]: gather over the small, static batch dim via
    # b unrolled compare/selects (no one-hot tensor, no MXU).
    rm = rm_ref[...]
    scale = jnp.zeros((b, l), x0.dtype)
    for k in range(b):                                  # static unroll, b is small
        ck = jnp.broadcast_to(coef[k:k + 1, 0:1], (b, l))
        scale = jnp.where(rm == k, ck, scale)
    o_ref[0] = d0 * scale + mu0
    o_ref[1] = d1 * scale + mu1
    o_ref[2] = d2 * scale + mu2


# ----------------------------- wrappers ------------------------------------ #

@jax.jit
def layer_norm(x, weight, bias):
    n = x.shape[0]
    tn = _pick_lane_tile(n)
    xt = x.T                                            # [3, n]  lane-dense
    out_t = pl.pallas_call(
        _layer_norm_kernel,
        out_shape=jax.ShapeDtypeStruct((3, n), x.dtype),
        grid=(n // tn,),
        in_specs=[pl.BlockSpec((3, tn), lambda i: (0, i)),
                  _SMEM, _SMEM],
        out_specs=pl.BlockSpec((3, tn), lambda i: (0, i)),
        compiler_params=pltpu.CompilerParams(
            dimension_semantics=("parallel",)),
    )(xt, weight, bias)
    return out_t.T


@jax.jit
def vfs_norm(x, g):
    n = x.shape[0]
    tn = _pick_lane_tile(n)
    xt = x.T                                            # [3, n]
    g_row = g.reshape(1, n).astype(x.dtype)
    out_t = pl.pallas_call(
        _vfs_norm_kernel,
        out_shape=jax.ShapeDtypeStruct((3, n), x.dtype),
        grid=(n // tn,),
        in_specs=[pl.BlockSpec((3, tn), lambda i: (0, i)),
                  pl.BlockSpec((1, tn), lambda i: (0, i))],
        out_specs=pl.BlockSpec((3, tn), lambda i: (0, i)),
        compiler_params=pltpu.CompilerParams(
            dimension_semantics=("parallel",)),
    )(xt, g_row)
    return out_t.T


@partial(jax.jit, static_argnames=("batch_size",))
def get_norm(x, g, batch_size):
    n = x.shape[0]
    b = batch_size
    l = n // b
    xt = x.reshape(b, l, 3).transpose(2, 0, 1)          # [3, b, l]  lanes = l
    g_col = g.reshape(b, 1).astype(x.dtype)
    # torch: g.unsqueeze(1).repeat(l, 1) -> flattened row r = i*l + j uses g[r % b]
    row_mod = (jnp.arange(n, dtype=jnp.int32) % b).reshape(b, l)
    out_t = pl.pallas_call(
        _get_norm_kernel,
        out_shape=jax.ShapeDtypeStruct((3, b, l), x.dtype),
        in_specs=[_VMEM, _VMEM, _VMEM],
        out_specs=_VMEM,
    )(xt, g_col, row_mod)
    return out_t.transpose(1, 2, 0).reshape(n, 3)


# ----------------------- pure-JAX references (torch-faithful) -------------- #

def _layer_norm_ref(x, weight, bias):
    mu = jnp.mean(x, axis=1, keepdims=True)
    var = jnp.mean((x - mu) ** 2, axis=1, keepdims=True)
    return (x - mu) / jnp.sqrt(var + EPS) * weight + bias


def _vfs_norm_ref(x, g):
    nrm = jnp.sqrt(jnp.sum(x * x, axis=1, keepdims=True))
    return g[:, None] * (x / nrm)


def _get_norm_ref(x, g, batch_size):
    b = batch_size
    l = x.shape[0] // b
    xr = x.reshape(b, l, 3)
    mu = jnp.broadcast_to(jnp.mean(xr, axis=1, keepdims=True), (b, l, 3))
    std_in = jnp.sum((xr - mu).reshape(b * l, 3) ** 2, axis=1)
    std = jnp.sqrt(std_in.reshape(b, l).sum(axis=1))                 # [b]
    xf = xr.reshape(b * l, 3)
    muf = mu.reshape(b * l, 3)
    g_row = jnp.tile(g[:, None], (l, 1))                             # [b*l, 1]
    std_row = jnp.tile(std[:, None], (l, 1))                         # [b*l, 1]
    return g_row * ((xf - muf) / (std_row + EPS)) + muf


# ------------------------------- main -------------------------------------- #

if __name__ == "__main__":
    key = jax.random.PRNGKey(0)
    n_body, batch_size = 16, 2            # x: [B*N, 3] = [16, 3], l = 8
    kx, kg1, kg2, kw, kb = jax.random.split(key, 5)

    x = jax.random.normal(kx, (n_body, 3), dtype=jnp.float32)

    # 'get_norm' parameters: g ~ randn(batch_size)
    g_get = jax.random.normal(kg1, (batch_size,), dtype=jnp.float32)
    out_get = get_norm(x, g_get, batch_size)

    # 'VFS_norm' parameters: g ~ randn(n_body)
    g_vfs = jax.random.normal(kg2, (n_body,), dtype=jnp.float32)
    out_vfs = vfs_norm(x, g_vfs)

    # 'layer_norm' parameters: nn.LayerNorm(3) affine params (randomized to test)
    w_ln = jax.random.normal(kw, (3,), dtype=jnp.float32)
    b_ln = jax.random.normal(kb, (3,), dtype=jnp.float32)
    out_ln = layer_norm(x, w_ln, b_ln)

    jax.block_until_ready((out_get, out_vfs, out_ln))

    assert jnp.allclose(out_get, _get_norm_ref(x, g_get, batch_size),
                        rtol=1e-4, atol=1e-5), "get_norm mismatch"
    assert jnp.allclose(out_vfs, _vfs_norm_ref(x, g_vfs),
                        rtol=1e-4, atol=1e-5), "vfs_norm mismatch"
    assert jnp.allclose(out_ln, _layer_norm_ref(x, w_ln, b_ln),
                        rtol=1e-4, atol=1e-5), "layer_norm mismatch"

    print("KERNEL_OK")
</pallas_src>

<mosaic_0001>
module attributes {stable_mosaic.version = 11 : i64} {
  func.func @_get_norm_kernel(%arg0: memref<3x2x8xf32, #tpu.memory_space<vmem>>, %arg1: memref<2x1xf32, #tpu.memory_space<vmem>>, %arg2: memref<2x8xi32, #tpu.memory_space<vmem>>, %arg3: memref<3x2x8xf32, #tpu.memory_space<vmem>>) attributes {dimension_semantics = [], scalar_prefetch = 0 : i64, scratch_operands = 0 : i64, tpu.core_type = #tpu.core_type<tc>} {
    %c0 = arith.constant 0 : index
    %c0_0 = arith.constant 0 : index
    %c0_1 = arith.constant 0 : index
    %0 = vector.load %arg0[%c0, %c0_0, %c0_1] : memref<3x2x8xf32, #tpu.memory_space<vmem>>, vector<1x2x8xf32>
    %1 = vector.shape_cast %0 : vector<1x2x8xf32> to vector<2x8xf32>
    %c1 = arith.constant 1 : index
    %c0_2 = arith.constant 0 : index
    %c0_3 = arith.constant 0 : index
    %2 = vector.load %arg0[%c1, %c0_2, %c0_3] : memref<3x2x8xf32, #tpu.memory_space<vmem>>, vector<1x2x8xf32>
    %3 = vector.shape_cast %2 : vector<1x2x8xf32> to vector<2x8xf32>
    %c2 = arith.constant 2 : index
    %c0_4 = arith.constant 0 : index
    %c0_5 = arith.constant 0 : index
    %4 = vector.load %arg0[%c2, %c0_4, %c0_5] : memref<3x2x8xf32, #tpu.memory_space<vmem>>, vector<1x2x8xf32>
    %5 = vector.shape_cast %4 : vector<1x2x8xf32> to vector<2x8xf32>
    %cst = arith.constant dense<0.000000e+00> : vector<2xf32>
    %6 = vector.multi_reduction <add>, %1, %cst [1] : vector<2x8xf32> to vector<2xf32>
    %7 = vector.shape_cast %6 : vector<2xf32> to vector<2x1xf32>
    %cst_6 = arith.constant 1.250000e-01 : f32
    %8 = vector.broadcast %cst_6 : f32 to vector<2x1xf32>
    %9 = arith.mulf %7, %8 : vector<2x1xf32>
    %cst_7 = arith.constant dense<0.000000e+00> : vector<2xf32>
    %10 = vector.multi_reduction <add>, %3, %cst_7 [1] : vector<2x8xf32> to vector<2xf32>
    %11 = vector.shape_cast %10 : vector<2xf32> to vector<2x1xf32>
    %cst_8 = arith.constant 1.250000e-01 : f32
    %12 = vector.broadcast %cst_8 : f32 to vector<2x1xf32>
    %13 = arith.mulf %11, %12 : vector<2x1xf32>
    %cst_9 = arith.constant dense<0.000000e+00> : vector<2xf32>
    %14 = vector.multi_reduction <add>, %5, %cst_9 [1] : vector<2x8xf32> to vector<2xf32>
    %15 = vector.shape_cast %14 : vector<2xf32> to vector<2x1xf32>
    %cst_10 = arith.constant 1.250000e-01 : f32
    %16 = vector.broadcast %cst_10 : f32 to vector<2x1xf32>
    %17 = arith.mulf %15, %16 : vector<2x1xf32>
    %18 = vector.broadcast %9 : vector<2x1xf32> to vector<2x8xf32>
    %19 = arith.subf %1, %18 : vector<2x8xf32>
    %20 = vector.broadcast %13 : vector<2x1xf32> to vector<2x8xf32>
    %21 = arith.subf %3, %20 : vector<2x8xf32>
    %22 = vector.broadcast %17 : vector<2x1xf32> to vector<2x8xf32>
    %23 = arith.subf %5, %22 : vector<2x8xf32>
    %24 = arith.mulf %19, %19 : vector<2x8xf32>
    %25 = arith.mulf %21, %21 : vector<2x8xf32>
    %26 = arith.addf %24, %25 : vector<2x8xf32>
    %27 = arith.mulf %23, %23 : vector<2x8xf32>
    %28 = arith.addf %26, %27 : vector<2x8xf32>
    %cst_11 = arith.constant dense<0.000000e+00> : vector<2xf32>
    %29 = vector.multi_reduction <add>, %28, %cst_11 [1] : vector<2x8xf32> to vector<2xf32>
    %30 = vector.shape_cast %29 : vector<2xf32> to vector<2x1xf32>
    %31 = math.sqrt %30 : vector<2x1xf32>
    %c0_12 = arith.constant 0 : index
    %c0_13 = arith.constant 0 : index
    %32 = vector.load %arg1[%c0_12, %c0_13] : memref<2x1xf32, #tpu.memory_space<vmem>>, vector<2x1xf32>
    %cst_14 = arith.constant 9.99999974E-6 : f32
    %33 = vector.broadcast %cst_14 : f32 to vector<2x1xf32>
    %34 = arith.addf %31, %33 : vector<2x1xf32>
    %35 = tpu.reciprocal %34 : vector<2x1xf32> -> vector<2x1xf32>
    %36 = arith.mulf %32, %35 : vector<2x1xf32>
    %c0_15 = arith.constant 0 : index
    %c0_16 = arith.constant 0 : index
    %37 = vector.load %arg2[%c0_15, %c0_16] : memref<2x8xi32, #tpu.memory_space<vmem>>, vector<2x8xi32>
    %cst_17 = arith.constant 0.000000e+00 : f32
    %38 = vector.broadcast %cst_17 : f32 to vector<2x8xf32>
    %39 = vector.extract_strided_slice %36 {offsets = [0, 0], sizes = [1, 1], strides = [1, 1]} : vector<2x1xf32> to vector<1x1xf32>
    %40 = vector.shape_cast %39 : vector<1x1xf32> to vector<1x1xf32>
    %41 = vector.broadcast %40 : vector<1x1xf32> to vector<2x8xf32>
    %c0_i32 = arith.constant 0 : i32
    %42 = vector.broadcast %c0_i32 : i32 to vector<2x8xi32>
    %43 = arith.cmpi eq, %37, %42 : vector<2x8xi32>
    %44 = arith.select %43, %41, %38 : vector<2x8xi1>, vector<2x8xf32>
    %45 = vector.extract_strided_slice %36 {offsets = [1, 0], sizes = [1, 1], strides = [1, 1]} : vector<2x1xf32> to vector<1x1xf32>
    %46 = vector.shape_cast %45 : vector<1x1xf32> to vector<1x1xf32>
    %47 = vector.broadcast %46 : vector<1x1xf32> to vector<2x8xf32>
    %c1_i32 = arith.constant 1 : i32
    %48 = vector.broadcast %c1_i32 : i32 to vector<2x8xi32>
    %49 = arith.cmpi eq, %37, %48 : vector<2x8xi32>
    %50 = arith.select %49, %47, %44 : vector<2x8xi1>, vector<2x8xf32>
    %51 = arith.mulf %19, %50 : vector<2x8xf32>
    %52 = vector.broadcast %9 : vector<2x1xf32> to vector<2x8xf32>
    %53 = arith.addf %51, %52 : vector<2x8xf32>
    %c0_18 = arith.constant 0 : index
    %c0_19 = arith.constant 0 : index
    %c0_20 = arith.constant 0 : index
    %54 = vector.load %arg3[%c0_18, %c0_19, %c0_20] : memref<3x2x8xf32, #tpu.memory_space<vmem>>, vector<1x2x8xf32>
    %55 = vector.shape_cast %54 : vector<1x2x8xf32> to vector<2x8xf32>
    %56 = vector.shape_cast %53 : vector<2x8xf32> to vector<1x2x8xf32>
    tpu.vector_store %arg3[%c0_18, %c0_19, %c0_20], %56 {strides = array<i32>} : memref<3x2x8xf32, #tpu.memory_space<vmem>>, vector<1x2x8xf32>,
    %57 = arith.mulf %21, %50 : vector<2x8xf32>
    %58 = vector.broadcast %13 : vector<2x1xf32> to vector<2x8xf32>
    %59 = arith.addf %57, %58 : vector<2x8xf32>
    %c1_21 = arith.constant 1 : index
    %c0_22 = arith.constant 0 : index
    %c0_23 = arith.constant 0 : index
    %60 = vector.load %arg3[%c1_21, %c0_22, %c0_23] : memref<3x2x8xf32, #tpu.memory_space<vmem>>, vector<1x2x8xf32>
    %61 = vector.shape_cast %60 : vector<1x2x8xf32> to vector<2x8xf32>
    %62 = vector.shape_cast %59 : vector<2x8xf32> to vector<1x2x8xf32>
    tpu.vector_store %arg3[%c1_21, %c0_22, %c0_23], %62 {strides = array<i32>} : memref<3x2x8xf32, #tpu.memory_space<vmem>>, vector<1x2x8xf32>,
    %63 = arith.mulf %23, %50 : vector<2x8xf32>
    %64 = vector.broadcast %17 : vector<2x1xf32> to vector<2x8xf32>
    %65 = arith.addf %63, %64 : vector<2x8xf32>
    %c2_24 = arith.constant 2 : index
    %c0_25 = arith.constant 0 : index
    %c0_26 = arith.constant 0 : index
    %66 = vector.load %arg3[%c2_24, %c0_25, %c0_26] : memref<3x2x8xf32, #tpu.memory_space<vmem>>, vector<1x2x8xf32>
    %67 = vector.shape_cast %66 : vector<1x2x8xf32> to vector<2x8xf32>
    %68 = vector.shape_cast %65 : vector<2x8xf32> to vector<1x2x8xf32>
    tpu.vector_store %arg3[%c2_24, %c0_25, %c0_26], %68 {strides = array<i32>} : memref<3x2x8xf32, #tpu.memory_space<vmem>>, vector<1x2x8xf32>,
    return
  }
}

</mosaic_0001>

<llo_original>
// kernel: get_norm.1
$region0: #{get_norm.1}
  #allocation0 [shape = 'u32[]', space=smem, size = 0x4, offset = 0x4, fixed_abs, tag = 'smem constant byte address 0x4 - core index']
  #allocation1 [shape = 'u32[72,128]{1,0:T(1,128)}', space=vmem, size = 0x9000, scoped, tag = 'internal scratch']
  %s0 = inlined_call_operand.vmem [shape: f32[3,2,8], index: 0, kind: input, shape index: {}]
  %s1 = inlined_call_operand.vmem [shape: f32[2,1], index: 1, kind: input, shape index: {}]
  %s2 = inlined_call_operand.vmem [shape: s32[2,8], index: 2, kind: input, shape index: {}]
  %s3 = inlined_call_operand.vmem [shape: f32[3,2,8], index: 3, kind: output, shape index: {}]
  %s4 = sld [smem:[#allocation0]]
  $region22: #{get_norm.1} parent=0
    _
  %s6 = ssub.s32 1, %s4
  %s7 = scalar_select 0, %s6, %s4
  // Predicated region
  $region2: #{get_norm.1} parent=0 // pred_check
    _
  $region3: #{get_norm.1} parent=0 // pred_check_branch
    %9 = sbr.rel (0) target = $region5
  $region4: #{get_norm.1} parent=0 // pred_region
    _
  $region5: #{get_norm.1} parent=0 // pred_fallthru
    _
  // Predicated region
  $region6: #{get_norm.1} parent=0 // pred_check
    _
  $region7: #{get_norm.1} parent=0 // pred_check_branch
    %11 = sbr.rel (0) target = $region9
  $region8: #{get_norm.1} parent=0 // pred_region
    _
  $region9: #{get_norm.1} parent=0 // pred_fallthru
    _
  // Predicated region
  $region10: #{get_norm.1} parent=0 // pred_check
    _
  $region11: #{get_norm.1} parent=0 // pred_check_branch
    %13 = sbr.rel (0) target = $region13
  $region12: #{get_norm.1} parent=0 // pred_region
    _
  $region13: #{get_norm.1} parent=0 // pred_fallthru
    _
  %v14 = vld [vmem:[%s0] sm:$0x3]
  %s15 = scalar_lea.vmem %s0, 2
  %v16 = vld [vmem:[%s15] sm:$0x3]
  %s17 = scalar_lea.vmem %s0, 4
  %v18 = vld [vmem:[%s17] sm:$0x3]
  %vm19 = vcmask 58368
  %v20 = vsel %vm19, %v14, 0.0
  %21 = vadd.xlane.f32.xlu0 %v20
  %v22 = vpop.xlane.xlu0 %21
  %v23 = vmul.f32 %v22, 0.125
  %v24 = vsel %vm19, %v16, 0.0
  %25 = vadd.xlane.f32.xlu0 %v24
  %v26 = vpop.xlane.xlu0 %25
  %v27 = vmul.f32 %v26, 0.125
  %v28 = vsel %vm19, %v18, 0.0
  %29 = vadd.xlane.f32.xlu0 %v28
  %v30 = vpop.xlane.xlu0 %29
  %v31 = vmul.f32 %v30, 0.125
  %v32 = vsub.f32 %v14, %v23
  %v33 = vsub.f32 %v16, %v27
  %v34 = vsub.f32 %v18, %v31
  %v35 = vmul.f32 %v32, %v32
  %v36 = vmul.f32 %v33, %v33
  %v37 = vadd.f32 %v35, %v36
  %v38 = vmul.f32 %v34, %v34
  %v39 = vadd.f32 %v37, %v38
  %v40 = vsel %vm19, %v39, 0.0
  %41 = vadd.xlane.f32.xlu0 %v40
  %v42 = vpop.xlane.xlu0 %41
  %v43 = vrsqrt.pop %v42
  %v44 = vmul.f32 %v43, %v42
  %v45 = vmul.f32 %v44, %v43
  %v46 = vmul.f32 0.5, %v45
  %v47 = vsub.f32 1.5, %v46
  %v48 = vmul.f32 %v43, %v47
  %v49 = vmul.f32 %v42, %v48
  %vm50 = vcmp.eq.f32.partialorder %v42, inf
  %v51 = vsel %vm50, %v42, %v49
  %vm52 = vcmp.eq.f32.partialorder %v42, 0.0
  %v53 = vand.u32 %v42, 2147483648
  %v54 = vsel %vm52, %v53, %v51
  %v55 = vld [vmem:[%s1] sm:$0x3]
  %v56 = vadd.f32 %v54, 1e-05
  %v57 = vrcp.pop %v56
  %v58 = vmul.f32 %v56, %v57
  %v59 = vsub.f32 1.0, %v58
  %v60 = vmul.f32 %v57, %v59
  %v61 = vadd.f32 %v57, %v60
  %vm62 = vweird.f32 %v56
  %vm63 = vweird.f32 %v57
  %vm64 = vmor %vm62, %vm63
  %v65 = vsel %vm64, %v57, %v61
  %v66 = vand.u32 2147483647, %v56
  %vm67 = vcmp.eq.f32.partialorder %v66, 8.507059e+37
  %v68 = vand.u32 %v56, 2147483648
  %v69 = vor.u32 1.1754944e-38, %v68
  %v70 = vsel %vm67, %v69, %v65
  %v71 = vmul.f32 %v55, %v70
  %v72 = vld [vmem:[%s2] sm:$0x3]
  %s74 = vtos %v71
  %v75 = vstv %s74
  %vm77 = vcmp.eq.s32.totalorder %v72, 0
  %v78 = vsel %vm77, %v75, 0.0
  %v79 = vrot.slane %v71, 1
  %s80 = vtos %v79
  %v81 = vstv %s80
  %vm83 = vcmp.eq.s32.totalorder %v72, 1
  %v84 = vsel %vm83, %v81, %v78
  %v85 = vmul.f32 %v32, %v84
  %v86 = vadd.f32 %v85, %v23
  %87 = vst.msk [vmem:[%s3] sm:$0x3] %vm19, %v86
  %v88 = vmul.f32 %v33, %v84
  %v89 = vadd.f32 %v88, %v27
  %s90 = scalar_lea.vmem %s3, 2
  %91 = vst.msk [vmem:[%s90] sm:$0x3] %vm19, %v89
  %v92 = vmul.f32 %v34, %v84
  %v93 = vadd.f32 %v92, %v31
  %s94 = scalar_lea.vmem %s3, 4
  %95 = vst.msk [vmem:[%s94] sm:$0x3] %vm19, %v93
  // Predicated region
  $region14: #{get_norm.1} parent=0 // pred_check
    _
  $region15: #{get_norm.1} parent=0 // pred_check_branch
    %97 = sbr.rel (0) target = $region17
  $region16: #{get_norm.1} parent=0 // pred_region
    _
  $region17: #{get_norm.1} parent=0 // pred_fallthru
    _
  // Predicated region
  $region18: #{get_norm.1} parent=0 // pred_check
    _
  $region19: #{get_norm.1} parent=0 // pred_check_branch
    %99 = sbr.rel (0) target = $region21
  $region20: #{get_norm.1} parent=0 // pred_region
    _
  $region21: #{get_norm.1} parent=0 // pred_fallthru
    _

</llo_original>
